<compile_context>
chip_gen: v7x
topology: tpu7x:2x2x1
jax: 0.10.0
libtpu: 0.0.40
codegen_flags: <defaults>
</compile_context>

<pallas_src>
import functools

import jax
import jax.numpy as jnp
from jax.experimental import pallas as pl
from jax.experimental.pallas import tpu as pltpu

_LN_EPS = 1e-5


def _mean_classifier_kernel(x_ref, lnw_ref, lnb_ref, fcw_ref, fcb_ref, o_ref):
    """x_ref: (TR, S, W) tile (input dtype) of flattened (B*T) rows."""
    x = x_ref[...].astype(jnp.float32)                        # cast in-kernel
    s = x.shape[1]

    # mean over the S axis
    m = jnp.sum(x, axis=1) * jnp.float32(1.0 / s)             # (TR, W)

    # LayerNorm over W: fused single-pass statistics (sum, sum-of-squares).
    inv_w = jnp.float32(1.0 / m.shape[-1])
    s1 = jnp.sum(m, axis=-1, keepdims=True)                   # (TR, 1)
    s2 = jnp.sum(m * m, axis=-1, keepdims=True)               # (TR, 1)
    mu = s1 * inv_w
    var = jnp.maximum(s2 * inv_w - mu * mu, 0.0)              # guard cancellation
    normed = (m - mu) * jax.lax.rsqrt(var + _LN_EPS)          # EUP rsqrt
    normed = normed * lnw_ref[...] + lnb_ref[...]             # (1, W) broadcast

    # Dropout(0.5) is identity in eval mode.

    # Linear: (TR, W) @ (W, Cp) + bias  (Cp = 128-padded class dim)
    out = jnp.dot(normed, fcw_ref[...], preferred_element_type=jnp.float32)
    o_ref[...] = out + fcb_ref[...]                           # (1, Cp) broadcast


def prepare_mean_classifier_params(ln_w, ln_b, fc_w, fc_b):
    """One-time parameter prep: f32 LN params, FC weight transposed and padded to
    a lane-dense 128-multiple class dim. Hoisted out of the per-call hot path."""
    W = ln_w.shape[0]
    C = fc_w.shape[0]
    Cp = ((C + 127) // 128) * 128
    lnw2 = ln_w.reshape(1, W).astype(jnp.float32)
    lnb2 = ln_b.reshape(1, W).astype(jnp.float32)
    fcw_p = jnp.zeros((W, Cp), jnp.float32).at[:, :C].set(fc_w.T.astype(jnp.float32))
    fcb_p = jnp.zeros((1, Cp), jnp.float32).at[:, :C].set(
        fc_b.reshape(1, C).astype(jnp.float32))
    return lnw2, lnb2, fcw_p, fcb_p


def _pick_row_tile(r, s, w, itemsize, vmem_budget_bytes=8 << 20):
    """Largest multiple-of-8 row tile whose double-buffered input fits the budget,
    capped at cdiv(r, 2) so the grid has >= 2 steps (v7x has 2 TensorCores)."""
    if r <= 8:
        return r
    per_row = 2 * s * w * itemsize                   # double-buffered bytes / row
    tr = max(1, vmem_budget_bytes // per_row)
    tr = min(tr, 1024, r, -(-r // 2))                # cdiv(r, 2)
    tr = max(8, (tr // 8) * 8)
    return int(tr)


def mean_classifier_forward(x, lnw2, lnb2, fcw_p, fcb_p, num_classes):
    """x: (B, T, S, L, W); prepared params from prepare_mean_classifier_params.
    Returns (B, T, num_classes)."""
    B, T, S, L, W = x.shape
    Cp = fcw_p.shape[1]
    R = B * T

    # Take L index 0 and flatten (B, T) -> rows. allow_input_fusion lets XLA fold
    # this slice into the kernel's input instead of materializing the sliced slab.
    # TODO(synk): express the L=0 slice directly as a strided input DMA once
    # size-1 second-to-minor block dims are allowed by the BlockSpec tiling rules.
    x_rows = x[:, :, :, 0, :].reshape(R, S, W)

    TR = _pick_row_tile(R, S, W, x_rows.dtype.itemsize)
    grid = (pl.cdiv(R, TR),)

    # Scoped-VMEM limit matching the chosen tiling (+ headroom); safe on v5e/v6e/v7x.
    needed = (2 * TR * S * W * x_rows.dtype.itemsize     # x double-buffer
              + 2 * (2 * W * 4)                          # LN weight / bias
              + 2 * (W * Cp * 4 + Cp * 4)                # FC weight / bias
              + 2 * TR * Cp * 4)                         # output double-buffer
    vmem_limit = int(min(48 << 20, max(16 << 20, needed + (8 << 20))))

    cost = pl.CostEstimate(
        flops=int(R * S * W + 8 * R * W + 2 * R * W * Cp),
        transcendentals=int(R),
        bytes_accessed=int(x_rows.dtype.itemsize * R * S * W
                           + 4 * (2 * W + W * Cp + Cp + R * Cp)),
    )

    out_padded = pl.pallas_call(
        _mean_classifier_kernel,
        out_shape=jax.ShapeDtypeStruct((R, Cp), jnp.float32),
        grid=grid,
        in_specs=[
            pl.BlockSpec((TR, S, W), lambda r: (r, 0, 0)),
            pl.BlockSpec((1, W), lambda r: (0, 0)),
            pl.BlockSpec((1, W), lambda r: (0, 0)),
            pl.BlockSpec((W, Cp), lambda r: (0, 0)),
            pl.BlockSpec((1, Cp), lambda r: (0, 0)),
        ],
        out_specs=pl.BlockSpec((TR, Cp), lambda r: (r, 0)),
        compiler_params=pltpu.CompilerParams(
            dimension_semantics=("parallel",),
            vmem_limit_bytes=vmem_limit,
            allow_input_fusion=[True, False, False, False, False],
        ),
        cost_estimate=cost,
    )(x_rows, lnw2, lnb2, fcw_p, fcb_p)

    return out_padded[:, :num_classes].reshape(B, T, num_classes)


def _reference(x, ln_w, ln_b, fc_w, fc_b):
    """Pure-JAX reference mirroring the PyTorch forward (eval mode)."""
    xt = x[:, :, :, 0, :]                                   # (B, T, S, W)
    m = jnp.mean(xt, axis=2)                                # (B, T, W)
    mu = jnp.mean(m, axis=-1, keepdims=True)
    var = jnp.mean((m - mu) ** 2, axis=-1, keepdims=True)
    feat = (m - mu) * jax.lax.rsqrt(var + _LN_EPS) * ln_w + ln_b
    return feat @ fc_w.T + fc_b                             # (B, T, C)


if __name__ == "__main__":
    # Small shapes consistent with the forward: (B, T, S, L, W)
    B, T, S, L, W = 2, 2, 4, 3, 32
    num_classes = 10

    key = jax.random.PRNGKey(0)
    kx, kw = jax.random.split(key)

    x = jax.random.normal(kx, (B, T, S, L, W), dtype=jnp.float32)

    # Deterministic parameter init (matches module __init__ semantics):
    #   LayerNorm(width): weight = ones, bias = zeros
    #   fc: weight ~ N(0, 0.02), bias = 0
    ln_w = jnp.ones((W,), dtype=jnp.float32)
    ln_b = jnp.zeros((W,), dtype=jnp.float32)
    fc_w = 0.02 * jax.random.normal(kw, (num_classes, W), dtype=jnp.float32)
    fc_b = jnp.zeros((num_classes,), dtype=jnp.float32)

    # One-time parameter prep (hoisted out of the hot path).
    lnw2, lnb2, fcw_p, fcb_p = prepare_mean_classifier_params(ln_w, ln_b, fc_w, fc_b)

    fwd = jax.jit(functools.partial(mean_classifier_forward, num_classes=num_classes))
    out = fwd(x, lnw2, lnb2, fcw_p, fcb_p)
    out = jax.block_until_ready(out)

    ref = _reference(x, ln_w, ln_b, fc_w, fc_b)
    assert out.shape == (B, T, num_classes)
    assert jnp.allclose(out, ref, atol=1e-4, rtol=1e-4), "mismatch vs reference"

    print("KERNEL_OK")
</pallas_src>

<mosaic_0001>
module attributes {stable_mosaic.version = 11 : i64} {
  func.func @_mean_classifier_kernel(%arg0: i32, %arg1: memref<4x4x32xf32, #tpu.memory_space<vmem>>, %arg2: memref<1x32xf32, #tpu.memory_space<vmem>>, %arg3: memref<1x32xf32, #tpu.memory_space<vmem>>, %arg4: memref<32x128xf32, #tpu.memory_space<vmem>>, %arg5: memref<1x128xf32, #tpu.memory_space<vmem>>, %arg6: memref<4x128xf32, #tpu.memory_space<vmem>>) attributes {dimension_semantics = [#tpu.dimension_semantics<parallel>], iteration_bounds = array<i64: 1>, scalar_prefetch = 0 : i64, scratch_operands = 0 : i64, tpu.core_type = #tpu.core_type<tc>, window_params = [{transform_indices = @transform_0, window_bounds = array<i64: 4, 4, 32>}, {pipeline_mode = #tpu.pipeline_mode<synchronous>, transform_indices = @transform_1, window_bounds = array<i64: 1, 32>}, {pipeline_mode = #tpu.pipeline_mode<synchronous>, transform_indices = @transform_2, window_bounds = array<i64: 1, 32>}, {pipeline_mode = #tpu.pipeline_mode<synchronous>, transform_indices = @transform_3, window_bounds = array<i64: 32, 128>}, {pipeline_mode = #tpu.pipeline_mode<synchronous>, transform_indices = @transform_4, window_bounds = array<i64: 1, 128>}, {transform_indices = @transform_5, window_bounds = array<i64: 4, 128>}]} {
    %c0 = arith.constant 0 : index
    %c0_0 = arith.constant 0 : index
    %c0_1 = arith.constant 0 : index
    %0 = vector.load %arg1[%c0, %c0_0, %c0_1] : memref<4x4x32xf32, #tpu.memory_space<vmem>>, vector<4x4x32xf32>
    %cst = arith.constant dense<0.000000e+00> : vector<4x32xf32>
    %1 = vector.multi_reduction <add>, %0, %cst [1] : vector<4x4x32xf32> to vector<4x32xf32>
    %cst_2 = arith.constant 2.500000e-01 : f32
    %2 = vector.broadcast %cst_2 : f32 to vector<4x32xf32>
    %3 = arith.mulf %1, %2 : vector<4x32xf32>
    %cst_3 = arith.constant dense<0.000000e+00> : vector<4xf32>
    %4 = vector.multi_reduction <add>, %3, %cst_3 [1] : vector<4x32xf32> to vector<4xf32>
    %5 = vector.shape_cast %4 : vector<4xf32> to vector<4x1xf32>
    %6 = arith.mulf %3, %3 : vector<4x32xf32>
    %cst_4 = arith.constant dense<0.000000e+00> : vector<4xf32>
    %7 = vector.multi_reduction <add>, %6, %cst_4 [1] : vector<4x32xf32> to vector<4xf32>
    %8 = vector.shape_cast %7 : vector<4xf32> to vector<4x1xf32>
    %cst_5 = arith.constant 3.125000e-02 : f32
    %9 = vector.broadcast %cst_5 : f32 to vector<4x1xf32>
    %10 = arith.mulf %5, %9 : vector<4x1xf32>
    %cst_6 = arith.constant 3.125000e-02 : f32
    %11 = vector.broadcast %cst_6 : f32 to vector<4x1xf32>
    %12 = arith.mulf %8, %11 : vector<4x1xf32>
    %13 = arith.mulf %10, %10 : vector<4x1xf32>
    %14 = arith.subf %12, %13 : vector<4x1xf32>
    %cst_7 = arith.constant 0.000000e+00 : f32
    %15 = vector.broadcast %cst_7 : f32 to vector<4x1xf32>
    %16 = arith.maximumf %14, %15 : vector<4x1xf32>
    %17 = vector.broadcast %10 : vector<4x1xf32> to vector<4x32xf32>
    %18 = arith.subf %3, %17 : vector<4x32xf32>
    %cst_8 = arith.constant 9.99999974E-6 : f32
    %19 = vector.broadcast %cst_8 : f32 to vector<4x1xf32>
    %20 = arith.addf %16, %19 : vector<4x1xf32>
    %21 = math.rsqrt %20 : vector<4x1xf32>
    %22 = vector.broadcast %21 : vector<4x1xf32> to vector<4x32xf32>
    %23 = arith.mulf %18, %22 : vector<4x32xf32>
    %c0_9 = arith.constant 0 : index
    %c0_10 = arith.constant 0 : index
    %24 = vector.load %arg2[%c0_9, %c0_10] : memref<1x32xf32, #tpu.memory_space<vmem>>, vector<1x32xf32>
    %25 = vector.broadcast %24 : vector<1x32xf32> to vector<4x32xf32>
    %26 = arith.mulf %23, %25 : vector<4x32xf32>
    %c0_11 = arith.constant 0 : index
    %c0_12 = arith.constant 0 : index
    %27 = vector.load %arg3[%c0_11, %c0_12] : memref<1x32xf32, #tpu.memory_space<vmem>>, vector<1x32xf32>
    %28 = vector.broadcast %27 : vector<1x32xf32> to vector<4x32xf32>
    %29 = arith.addf %26, %28 : vector<4x32xf32>
    %c0_13 = arith.constant 0 : index
    %c0_14 = arith.constant 0 : index
    %30 = vector.load %arg4[%c0_13, %c0_14] : memref<32x128xf32, #tpu.memory_space<vmem>>, vector<32x128xf32>
    %cst_15 = arith.constant dense<0.000000e+00> : vector<4x128xf32>
    %31 = tpu.matmul %29, %30, %cst_15 {dimension_numbers = #tpu.dot_dimension_numbers<[1], [0], [0], [1], [0, 0, 1, 1], [], []>} : vector<4x32xf32>, vector<32x128xf32>, vector<4x128xf32> -> vector<4x128xf32>
    %c0_16 = arith.constant 0 : index
    %c0_17 = arith.constant 0 : index
    %32 = vector.load %arg5[%c0_16, %c0_17] : memref<1x128xf32, #tpu.memory_space<vmem>>, vector<1x128xf32>
    %33 = vector.broadcast %32 : vector<1x128xf32> to vector<4x128xf32>
    %34 = arith.addf %31, %33 : vector<4x128xf32>
    %c0_18 = arith.constant 0 : index
    %c0_19 = arith.constant 0 : index
    %35 = vector.load %arg6[%c0_18, %c0_19] : memref<4x128xf32, #tpu.memory_space<vmem>>, vector<4x128xf32>
    tpu.vector_store %arg6[%c0_18, %c0_19], %34 {strides = array<i32>} : memref<4x128xf32, #tpu.memory_space<vmem>>, vector<4x128xf32>,
    return
  }
  func.func @transform_0(%arg0: i32) -> (i32, i32, i32) {
    %c0_i32 = arith.constant 0 : i32
    %c0_i32_0 = arith.constant 0 : i32
    %c0_i32_1 = arith.constant 0 : i32
    return %arg0, %c0_i32, %c0_i32_0 : i32, i32, i32
  }
  func.func @transform_1(%arg0: i32) -> (i32, i32) {
    %c0_i32 = arith.constant 0 : i32
    %c0_i32_0 = arith.constant 0 : i32
    %c0_i32_1 = arith.constant 0 : i32
    return %c0_i32, %c0_i32_0 : i32, i32
  }
  func.func @transform_2(%arg0: i32) -> (i32, i32) {
    %c0_i32 = arith.constant 0 : i32
    %c0_i32_0 = arith.constant 0 : i32
    %c0_i32_1 = arith.constant 0 : i32
    return %c0_i32, %c0_i32_0 : i32, i32
  }
  func.func @transform_3(%arg0: i32) -> (i32, i32) {
    %c0_i32 = arith.constant 0 : i32
    %c0_i32_0 = arith.constant 0 : i32
    %c0_i32_1 = arith.constant 0 : i32
    return %c0_i32, %c0_i32_0 : i32, i32
  }
  func.func @transform_4(%arg0: i32) -> (i32, i32) {
    %c0_i32 = arith.constant 0 : i32
    %c0_i32_0 = arith.constant 0 : i32
    %c0_i32_1 = arith.constant 0 : i32
    return %c0_i32, %c0_i32_0 : i32, i32
  }
  func.func @transform_5(%arg0: i32) -> (i32, i32) {
    %c0_i32 = arith.constant 0 : i32
    %c0_i32_0 = arith.constant 0 : i32
    return %arg0, %c0_i32 : i32, i32
  }
}

</mosaic_0001>

<llo_original>
// kernel: mean_classifier_forward.1
$region0: #{mean_classifier_forward.1}
  #allocation0 [shape = 'u32[]', space=smem, size = 0x4, offset = 0x4, fixed_abs, tag = 'smem constant byte address 0x4 - core index']
  #allocation1 [shape = 'u32[144,128]{1,0:T(1,128)}', space=vmem, size = 0x12000, scoped, tag = 'internal scratch']
  %s0 = inlined_call_operand.vmem [shape: f32[4,4,32], index: 0, kind: input, shape index: {}]
  %s1 = inlined_call_operand.vmem [shape: f32[1,32], index: 1, kind: input, shape index: {}]
  %s2 = inlined_call_operand.vmem [shape: f32[1,32], index: 2, kind: input, shape index: {}]
  %s3 = inlined_call_operand.hbm [shape: f32[32,128], index: 3, kind: input, shape index: {}]
  %s4 = inlined_call_operand.vmem [shape: f32[1,128], index: 4, kind: input, shape index: {}]
  %s5 = inlined_call_operand.hbm [shape: f32[4,128], index: 5, kind: output, shape index: {}]
  %s6 = sld [smem:[#allocation0]]
  $region34: #{mean_classifier_forward.1} parent=0
    _
  %s8 = ssub.s32 1, %s6
  %s9 = scalar_select 0, %s8, %s6
  $region1: #{mean_classifier_forward.1} parent=0
    #allocation2 [shape = 'u8[16384]{0}', space=vmem, size = 0x4000, scoped, tag = 'input window, operand 3, single buffered']
    #allocation3 [shape = 's32[1]{0}', space=sflag, size = 0x4, scoped, tag = 'scoped memory for mean_classifier_forward.1']
    #allocation4 [shape = 's32[1]{0}', space=sflag, size = 0x4, scoped, tag = 'scoped memory for mean_classifier_forward.1']
    #allocation5 [shape = 'u8[2048]{0}', space=vmem, size = 0x800, scoped, tag = 'output window, operand 0, single buffered']
    %10 = vsyncpa [#allocation3], 0
    %11 = vsyncpa [#allocation4], 0
    // Predicated region
    $region2: #{mean_classifier_forward.1} parent=1 // pred_check
      _
    $region3: #{mean_classifier_forward.1} parent=1 // pred_check_branch
      %13 = sbr.rel (0) target = $region5
    $region4: #{mean_classifier_forward.1} parent=1 // pred_region
      _
    $region5: #{mean_classifier_forward.1} parent=1 // pred_fallthru
      _
    // Predicated region
    $region6: #{mean_classifier_forward.1} parent=1 // pred_check
      _
    $region7: #{mean_classifier_forward.1} parent=1 // pred_check_branch
      %15 = sbr.rel (0) target = $region9
    $region8: #{mean_classifier_forward.1} parent=1 // pred_region
      _
    $region9: #{mean_classifier_forward.1} parent=1 // pred_fallthru
      _
    // Predicated region
    $region10: #{mean_classifier_forward.1} parent=1 // pred_check
      _
    $region11: #{mean_classifier_forward.1} parent=1 // pred_check_branch
      %17 = sbr.rel (0) target = $region13
    $region12: #{mean_classifier_forward.1} parent=1 // pred_region
      _
    $region13: #{mean_classifier_forward.1} parent=1 // pred_fallthru
      _
    // Predicated region
    $region14: #{mean_classifier_forward.1} parent=1 // pred_check
      _
    $region15: #{mean_classifier_forward.1} parent=1 // pred_check_branch
      %19 = sbr.rel (0) target = $region17
    $region16: #{mean_classifier_forward.1} parent=1 // pred_region
      %s21 = ssub.s32 512, 512
      %22 = vsyncadd [#allocation3], %s21
      %s23 = sshll.u32 [#allocation2], 4
      %s24 = int_to_ptr.vmem [resolvable:$true] %s23
      %29 = dma.hbm_to_vmem [thread:$0]  %s3, 512, %s24, [#allocation3], 128, 128, 8
    $region17: #{mean_classifier_forward.1} parent=1 // pred_fallthru
      _
    // Predicated region
    $region18: #{mean_classifier_forward.1} parent=1 // pred_check
      _
    $region19: #{mean_classifier_forward.1} parent=1 // pred_check_branch
      %31 = sbr.rel (0) target = $region21
    $region20: #{mean_classifier_forward.1} parent=1 // pred_region
      _
    $region21: #{mean_classifier_forward.1} parent=1 // pred_fallthru
      _
    // Predicated region
    $region22: #{mean_classifier_forward.1} parent=1 // pred_check
      _
    $region23: #{mean_classifier_forward.1} parent=1 // pred_check_branch
      %33 = sbr.rel (0) target = $region25
    $region24: #{mean_classifier_forward.1} parent=1 // pred_region
      %34 = dma.done [#allocation3], 512
    $region25: #{mean_classifier_forward.1} parent=1 // pred_fallthru
      _
    %v35 = vld [vmem:[%s0] sm:$0xf]
    %v36 = vld [vmem:[%s0 + $0x4] sm:$0xf]
    %v37 = vld [vmem:[%s0 + $0x8] sm:$0xf]
    %v38 = vld [vmem:[%s0 + $0xc] sm:$0xf]
    %vm39 = vcmask 257024
    %v40 = vsel %vm39, %v35, 0.0
    %v41 = vrot.slane %v40, 4
    %v42 = vadd.f32 %v40, %v41
    %v43 = vrot.slane %v42, 2
    %v44 = vadd.f32 %v42, %v43
    %v45 = vrot.slane %v44, 1
    %v46 = vadd.f32 %v44, %v45
    %v47 = vsel %vm39, %v36, 0.0
    %v48 = vrot.slane %v47, 4
    %v49 = vadd.f32 %v47, %v48
    %v50 = vrot.slane %v49, 2
    %v51 = vadd.f32 %v49, %v50
    %v52 = vrot.slane %v51, 1
    %v53 = vadd.f32 %v51, %v52
    %v54 = vsel %vm39, %v37, 0.0
    %v55 = vrot.slane %v54, 4
    %v56 = vadd.f32 %v54, %v55
    %v57 = vrot.slane %v56, 2
    %v58 = vadd.f32 %v56, %v57
    %v59 = vrot.slane %v58, 1
    %v60 = vadd.f32 %v58, %v59
    %v61 = vsel %vm39, %v38, 0.0
    %v62 = vrot.slane %v61, 4
    %v63 = vadd.f32 %v61, %v62
    %v64 = vrot.slane %v63, 2
    %v65 = vadd.f32 %v63, %v64
    %v66 = vrot.slane %v65, 1
    %v67 = vadd.f32 %v65, %v66
    %v68 = vmul.f32 %v46, 0.25
    %v69 = vmul.f32 %v53, 0.25
    %v70 = vmul.f32 %v60, 0.25
    %v71 = vmul.f32 %v67, 0.25
    %vm76 = vcmask 1041409
    %v77 = vsel %vm76, %v69, %v68
    %vm78 = vcmask 1042434
    %v79 = vsel %vm78, %v70, %v77
    %vm80 = vcmask 1043459
    %v81 = vsel %vm80, %v71, %v79
    %v83 = vsel %vm39, %v81, 0.0
    %84 = vadd.xlane.f32.xlu0 %v83
    %v85 = vpop.xlane.xlu0 %84
    %v86 = vmul.f32 %v68, %v68
    %v87 = vmul.f32 %v69, %v69
    %v88 = vmul.f32 %v70, %v70
    %v89 = vmul.f32 %v71, %v71
    %v94 = vsel %vm76, %v87, %v86
    %v95 = vsel %vm78, %v88, %v94
    %v96 = vsel %vm80, %v89, %v95
    %v98 = vsel %vm39, %v96, 0.0
    %99 = vadd.xlane.f32.xlu0 %v98
    %v100 = vpop.xlane.xlu0 %99
    %v101 = vmul.f32 %v85, 0.03125
    %v102 = vmul.f32 %v100, 0.03125
    %v103 = vmul.f32 %v101, %v101
    %v104 = vsub.f32 %v102, %v103
    %v105 = vmax.f32 %v104, 0.0
    %v107 = vrot.slane %v101, 1
    %v108 = vrot.slane %v101, 2
    %v109 = vrot.slane %v101, 3
    %v114 = vsub.f32 %v68, %v101
    %v115 = vsub.f32 %v69, %v107
    %v116 = vsub.f32 %v70, %v108
    %v117 = vsub.f32 %v71, %v109
    %v118 = vadd.f32 %v105, 1e-05
    %v119 = vrsqrt.pop %v118
    %v121 = vrot.slane %v119, 1
    %v122 = vrot.slane %v119, 2
    %v123 = vrot.slane %v119, 3
    %v128 = vmul.f32 %v114, %v119
    %v129 = vmul.f32 %v115, %v121
    %v130 = vmul.f32 %v116, %v122
    %v131 = vmul.f32 %v117, %v123
    %v132 = vld [vmem:[%s1] sm:$0x1]
    %v134 = vlaneseq
    %v135 = vshrl.u32 %v134, 7
    %v136 = vsub.s32 0, %v135
    %v137 = vrot.slane %v132, %v136
    %v139 = vmul.f32 %v128, %v137
    %v140 = vmul.f32 %v129, %v137
    %v141 = vmul.f32 %v130, %v137
    %v142 = vmul.f32 %v131, %v137
    %v143 = vld [vmem:[%s2] sm:$0x1]
    %v145 = vlaneseq
    %v146 = vshrl.u32 %v145, 7
    %v147 = vsub.s32 0, %v146
    %v148 = vrot.slane %v143, %v147
    %v150 = vadd.f32 %v139, %v148
    %v151 = vadd.f32 %v140, %v148
    %v152 = vadd.f32 %v141, %v148
    %v153 = vadd.f32 %v142, %v148
    %v154 = vld [vmem:[#allocation2] sm:$0xff]
    %v155 = vld [vmem:[#allocation2 + $0x8] sm:$0xff]
    %v156 = vld [vmem:[#allocation2 + $0x10] sm:$0xff]
    %v157 = vld [vmem:[#allocation2 + $0x18] sm:$0xff]
    %v158 = vld [vmem:[%s4] sm:$0x1]
    %v160 = vlaneseq
    %v161 = vshrl.u32 %v160, 7
    %v162 = vsub.s32 0, %v161
    %v163 = vrot.slane %v158, %v162
    %v169 = vrot.slane %v151, 7
    %v170 = vsel %vm76, %v169, %v150
    %v171 = vrot.slane %v152, 6
    %v172 = vsel %vm78, %v171, %v170
    %v173 = vrot.slane %v153, 5
    %v174 = vsel %vm80, %v173, %v172
    %vm175 = vcmask 261120
    %v176 = vsel %vm175, %v174, 0
    %178 = vmatprep.subr.mxu0 0.0
    %179 = vmatpush1.msra.mxu0 %v154
    %180 = vmatprep.subr.mxu0 0.0
    %181 = vmatpush1.msra.mxu0 %v155
    %182 = vmatprep.subr.mxu0 0.0
    %183 = vmatpush1.msra.mxu0 %v156
    %184 = vmatprep.subr.mxu0 0.0
    %185 = vmatpush1.msra.mxu0 %v157
    %186 = vmatprep.subr.mxu0 0.0
    %187 = vmatpush1.msra.mxu0 0.0
    %188 = vmatprep.subr.mxu0 0.0
    %189 = vmatpush1.msra.mxu0 0.0
    %190 = vmatprep.subr.mxu0 0.0
    %191 = vmatpush1.msra.mxu0 0.0
    %192 = vmatprep.subr.mxu0 0.0
    %193 = vmatpush1.msra.mxu0 0.0
    %194 = vmatprep.subr.mxu0 0.0
    %195 = vmatpush1.msra.mxu0 0.0
    %196 = vmatprep.subr.mxu0 0.0
    %197 = vmatpush1.msra.mxu0 0.0
    %198 = vmatprep.subr.mxu0 0.0
    %199 = vmatpush1.msra.mxu0 0.0
    %200 = vmatprep.subr.mxu0 0.0
    %201 = vmatpush1.msra.mxu0 0.0
    %202 = vmatprep.subr.mxu0 0.0
    %203 = vmatpush1.msra.mxu0 0.0
    %204 = vmatprep.subr.mxu0 0.0
    %205 = vmatpush1.msra.mxu0 0.0
    %206 = vmatprep.subr.mxu0 0.0
    %207 = vmatpush1.msra.mxu0 0.0
    %208 = vmatprep.subr.mxu0 0.0
    %209 = vmatpush1.msra.mxu0 0.0
    %210 = vmatprep.subr.mxu0 0.0
    %211 = vmatpush1.msra.mxu0 0.0
    %212 = vmatprep.subr.mxu0 0.0
    %213 = vmatpush1.msra.mxu0 0.0
    %214 = vmatprep.subr.mxu0 0.0
    %215 = vmatpush1.msra.mxu0 0.0
    %216 = vmatprep.subr.mxu0 0.0
    %217 = vmatpush1.msra.mxu0 0.0
    %218 = vmatprep.subr.mxu0 0.0
    %219 = vmatpush1.msra.mxu0 0.0
    %220 = vmatprep.subr.mxu0 0.0
    %221 = vmatpush1.msra.mxu0 0.0
    %222 = vmatprep.subr.mxu0 0.0
    %223 = vmatpush1.msra.mxu0 0.0
    %224 = vmatprep.subr.mxu0 0.0
    %225 = vmatpush1.msra.mxu0 0.0
    %226 = vmatprep.subr.mxu0 0.0
    %227 = vmatpush1.msra.mxu0 0.0
    %228 = vmatprep.subr.mxu0 0.0
    %229 = vmatpush1.msra.mxu0 0.0
    %230 = vmatprep.subr.mxu0 0.0
    %231 = vmatpush1.msra.mxu0 0.0
    %232 = vmatprep.subr.mxu0 0.0
    %233 = vmatpush1.msra.mxu0 0.0
    %234 = vmatprep.subr.mxu0 0.0
    %235 = vmatpush1.msra.mxu0 0.0
    %236 = vmatprep.subr.mxu0 0.0
    %237 = vmatpush1.msra.mxu0 0.0
    %238 = vmatprep.subr.mxu0 0.0
    %239 = vmatpush1.msra.mxu0 0.0
    %240 = vmatprep.subr.mxu0 0.0
    %241 = vmatpush1.msra.mxu0 0.0
    %242 = vmatprep.mubr.f32.mxu0 0.0
    %243 = vmatmul.mubr.f32.gmra.mrb[0].mxu0 %v176
    %v244 = vpop.f32.mrb[0].mxu0
    %v245 = vadd.f32 %v163, %v244
    %v246 = vpop.f32.mrb[0].mxu0
    %247 = vdwg.mxu0
    %248 = vst [vmem:[#allocation5] sm:$0xf] %v245
    // Predicated region
    $region26: #{mean_classifier_forward.1} parent=1 // pred_check
      _
    $region27: #{mean_classifier_forward.1} parent=1 // pred_check_branch
      %250 = sbr.rel (0) target = $region29
    $region28: #{mean_classifier_forward.1} parent=1 // pred_region
      %s252 = ssub.s32 64, 64
      %253 = vsyncadd [#allocation4], %s252
      %s255 = sshll.u32 [#allocation5], 4
      %s256 = int_to_ptr.vmem [resolvable:$true] %s255
      %258 = dma.vmem_to_hbm [thread:$0]  %s256, 64, %s5, [#allocation4]
    $region29: #{mean_classifier_forward.1} parent=1 // pred_fallthru
      _
    // Predicated region
    $region30: #{mean_classifier_forward.1} parent=1 // pred_check
      _
    $region31: #{mean_classifier_forward.1} parent=1 // pred_check_branch
      %260 = sbr.rel (0) target = $region33
    $region32: #{mean_classifier_forward.1} parent=1 // pred_region
      %261 = dma.done [#allocation4], 64
    $region33: #{mean_classifier_forward.1} parent=1 // pred_fallthru
      _
    %262 = vsyncpa [#allocation3], 1
    %263 = vsyncpa [#allocation4], 1

</llo_original>
